<compile_context>
chip_gen: v7x
topology: tpu7x:2x2x1
jax: 0.10.0
libtpu: 0.0.40
codegen_flags: <defaults>
</compile_context>

<pallas_src>
import functools

import jax
import jax.numpy as jnp
from jax.experimental import pallas as pl
from jax.experimental.pallas import tpu as pltpu


def _elu(v):
    # PyTorch nn.ELU (alpha=1): v if v > 0 else exp(v) - 1.
    # No clamp: the select discards exp() of positive lanes (inf, never NaN).
    return jnp.where(v > 0, v, jnp.exp(v) - 1.0)


def _round_up(x, m):
    return ((x + m - 1) // m) * m


def _choose_tile(padded_n, target_tile):
    """Pick a lane-tile that divides padded_n (multiple of 128), <= target, >=2 tiles if possible."""
    blocks = padded_n // 128
    max_tb = max(1, min(target_tile // 128, blocks))
    if blocks >= 2:
        max_tb = max(1, min(max_tb, blocks // 2))  # keep >= 2 grid tiles (v7x dual-TC)
    for tb in range(max_tb, 0, -1):
        if blocks % tb == 0:
            return tb * 128
    return 128


def cvae_loss_kernel(xcT_ref, xT_ref, epsT_ref,
                     w1_ref, wmv_ref, bmv_ref,
                     wdz_ref, wd2_ref, bd2_ref,
                     loss_ref, *, latent_dim, hidden_dim):
    f32 = jnp.float32
    bf16 = jnp.bfloat16

    xc = xcT_ref[...]                 # (in+cond+1, T) bf16 fused stream [x; c; 1]
    x = xT_ref[...]                   # (in_dim,     T) f32 for the recon diff
    eps = epsT_ref[...].astype(f32)   # (latent,     T) shipped bf16, math in f32

    # Stacked first pass: rows [0:H] = We_x@x + We_c@c + be (encoder pre-act),
    #                     rows [H:2H] = Wd_c@c + bd1       (decoder c-contribution).
    pre = jnp.dot(w1_ref[...], xc, preferred_element_type=f32)
    h_enc = _elu(pre[:hidden_dim, :])
    dec_c = pre[hidden_dim:, :]

    # Fused mean / log_var projection: one (2*latent, hidden) matmul, static slices.
    mv = (jnp.dot(wmv_ref[...], h_enc.astype(bf16), preferred_element_type=f32)
          + bmv_ref[...])
    mean = mv[:latent_dim, :]
    log_var = mv[latent_dim:, :]

    # Reparameterization; exp(log_var) reused as std*std (saves one EUP pass).
    std = jnp.exp(0.5 * log_var)
    z = mean + eps * std
    exp_log_var = std * std

    # Decoder: Linear(ELU(Wd_z @ z + (Wd_c @ c + bd1)))
    hd = _elu(jnp.dot(wdz_ref[...], z.astype(bf16), preferred_element_type=f32) + dec_c)
    recon_x = (jnp.dot(wd2_ref[...], hd.astype(bf16), preferred_element_type=f32)
               + bd2_ref[...])

    # Per-row losses as sublane reductions -> one lane-dense (2, T) store.
    diff = recon_x - x
    recon = jnp.sum(diff * diff, axis=0, keepdims=True)
    kld = -0.5 * jnp.sum(1.0 + log_var - mean * mean - exp_log_var,
                         axis=0, keepdims=True)
    loss_ref[...] = jnp.concatenate([recon, kld], axis=0)


def cvae_losses(x, c, eps, kernel_params, *, target_tile=4096):
    """Runs the CVAE hot path inside a row-tiled Pallas kernel.

    x:   (N, in_dim)   target
    c:   (N, cond_dim) condition context
    eps: (N, latent)   reparameterization noise
    Returns per-row (N,) recon_loss and KLD, both float32.
    """
    n, in_dim = x.shape
    cond_dim = c.shape[1]
    latent_dim = eps.shape[1]
    w1, wmv, bmv, wdz, wd2, bd2 = kernel_params
    hidden_dim = wdz.shape[0]
    fused_in = in_dim + cond_dim + 1

    f32, bf16 = jnp.float32, jnp.bfloat16
    padded_n = _round_up(n, 128)           # pad lanes to 128 only (no pad-to-tile waste)
    pad = padded_n - n
    tile_m = _choose_tile(padded_n, target_tile)
    grid = padded_n // tile_m

    # Feature-major layout; single fused [x; c; 1] bf16 stream feeds the stacked matmul.
    ones = jnp.ones((n, 1), f32)
    xc = jnp.concatenate([x.astype(f32), c.astype(f32), ones], axis=1)
    xcT = jnp.pad(xc.T.astype(bf16), ((0, 0), (0, pad)))
    xT = jnp.pad(x.T.astype(f32), ((0, 0), (0, pad)))
    epsT = jnp.pad(eps.T.astype(bf16), ((0, 0), (0, pad)))

    data_specs = [
        pl.BlockSpec((fused_in, tile_m), lambda i: (0, i)),
        pl.BlockSpec((in_dim, tile_m), lambda i: (0, i)),
        pl.BlockSpec((latent_dim, tile_m), lambda i: (0, i)),
    ]
    # Weights / biases: constant index_map -> DMA'd once, resident in VMEM across the grid.
    weight_specs = [pl.BlockSpec(w.shape, lambda i: (0, 0)) for w in kernel_params]
    out_specs = pl.BlockSpec((2, tile_m), lambda i: (0, i))
    out_shape = jax.ShapeDtypeStruct((2, padded_n), f32)

    loss = pl.pallas_call(
        functools.partial(cvae_loss_kernel,
                          latent_dim=latent_dim, hidden_dim=hidden_dim),
        grid=(grid,),
        in_specs=data_specs + weight_specs,
        out_specs=out_specs,
        out_shape=out_shape,
        compiler_params=pltpu.CompilerParams(
            dimension_semantics=("parallel",),
            vmem_limit_bytes=48 * 1024 * 1024),
    )(xcT, xT, epsT, *kernel_params)

    return loss[0, :n], loss[1, :n]


def traj_cvae_forward(context, target_hand, future_valid, eps, kernel_params):
    """TrajCVAE.forward with condition_contact=False, return_pred=False."""
    batch_size = future_valid.shape[0]
    condition_context = context
    recon_loss, kld = cvae_losses(target_hand, condition_context, eps, kernel_params)

    kld = kld.reshape(batch_size, 2, -1).sum(-1)
    kld = (kld * future_valid).sum(1)
    recon_loss = recon_loss.reshape(batch_size, 2, -1).sum(-1)
    traj_loss = (recon_loss * future_valid).sum(1)
    return traj_loss, kld


def init_params(key, in_dim, hidden_dim, latent_dim, condition_dim):
    """Synthetic params in PyTorch nn.Linear layout: weight (out, in), bias (out,)."""
    ks = jax.random.split(key, 12)
    s = 0.1
    we_x = s * jax.random.normal(ks[0], (hidden_dim, in_dim), jnp.float32)
    we_c = s * jax.random.normal(ks[1], (hidden_dim, condition_dim), jnp.float32)
    be = s * jax.random.normal(ks[2], (hidden_dim,), jnp.float32)
    wm = s * jax.random.normal(ks[3], (latent_dim, hidden_dim), jnp.float32)
    bm = s * jax.random.normal(ks[4], (latent_dim,), jnp.float32)
    wv = s * jax.random.normal(ks[5], (latent_dim, hidden_dim), jnp.float32)
    bv = s * jax.random.normal(ks[6], (latent_dim,), jnp.float32)
    wd_z = s * jax.random.normal(ks[7], (hidden_dim, latent_dim), jnp.float32)
    wd_c = s * jax.random.normal(ks[8], (hidden_dim, condition_dim), jnp.float32)
    bd1 = s * jax.random.normal(ks[9], (hidden_dim,), jnp.float32)
    wd2 = s * jax.random.normal(ks[10], (in_dim, hidden_dim), jnp.float32)
    bd2 = s * jax.random.normal(ks[11], (in_dim,), jnp.float32)
    return (we_x, we_c, be, wm, bm, wv, bv, wd_z, wd_c, bd1, wd2, bd2)


def prepare_kernel_params(params):
    """Stack first-pass weights (+ folded biases), fuse mean/log_var, cast MXU weights to bf16."""
    (we_x, we_c, be, wm, bm, wv, bv, wd_z, wd_c, bd1, wd2, bd2) = params
    f32, bf16 = jnp.float32, jnp.bfloat16
    hidden_dim, in_dim = we_x.shape

    # W1 = [[We_x, We_c, be], [0, Wd_c, bd1]]  acting on the fused stream [x; c; 1].
    top = jnp.concatenate([we_x, we_c, be.reshape(-1, 1)], axis=1)
    bot = jnp.concatenate([jnp.zeros((hidden_dim, in_dim), f32), wd_c,
                           bd1.reshape(-1, 1)], axis=1)
    w1 = jnp.concatenate([top, bot], axis=0).astype(bf16)     # (2*hidden, in+cond+1)

    wmv = jnp.concatenate([wm, wv], axis=0).astype(bf16)      # (2*latent, hidden)
    bmv = jnp.concatenate([bm, bv], axis=0).reshape(-1, 1).astype(f32)
    return (w1, wmv, bmv, wd_z.astype(bf16), wd2.astype(bf16),
            bd2.reshape(-1, 1).astype(f32))


def cvae_reference(x, c, eps, kernel_params, latent_dim):
    """Pure-JAX reference mirroring the kernel math (same bf16 casts / fusions)."""
    w1, wmv, bmv, wdz, wd2, bd2 = kernel_params
    f32, bf16 = jnp.float32, jnp.bfloat16
    hidden_dim = wdz.shape[0]
    n = x.shape[0]

    ones = jnp.ones((n, 1), f32)
    xcT = jnp.concatenate([x.astype(f32), c.astype(f32), ones], axis=1).T.astype(bf16)
    xT = x.T.astype(f32)
    epsT = eps.T.astype(bf16).astype(f32)

    pre = jnp.dot(w1, xcT, preferred_element_type=f32)
    h = _elu(pre[:hidden_dim])
    dec_c = pre[hidden_dim:]
    mv = jnp.dot(wmv, h.astype(bf16), preferred_element_type=f32) + bmv
    mean, log_var = mv[:latent_dim], mv[latent_dim:]
    std = jnp.exp(0.5 * log_var)
    z = mean + epsT * std
    hd = _elu(jnp.dot(wdz, z.astype(bf16), preferred_element_type=f32) + dec_c)
    recon_x = jnp.dot(wd2, hd.astype(bf16), preferred_element_type=f32) + bd2
    diff = recon_x - xT
    recon = jnp.sum(diff * diff, axis=0)
    kld = -0.5 * jnp.sum(1.0 + log_var - mean * mean - std * std, axis=0)
    return recon, kld


if __name__ == "__main__":
    # Small shapes consistent with TrajCVAE.forward:
    #   context:     (batch*2*T, condition_dim)
    #   target_hand: (batch*2*T, in_dim)
    #   future_valid:(batch, 2)
    batch = 2
    time_steps = 4
    n_rows = batch * 2 * time_steps           # 16
    in_dim = 8
    hidden_dim = 32
    latent_dim = 16
    condition_dim = 32

    key = jax.random.PRNGKey(0)
    k_ctx, k_tgt, k_eps, k_par = jax.random.split(key, 4)

    context = jax.random.normal(k_ctx, (n_rows, condition_dim), jnp.float32)
    target_hand = jax.random.normal(k_tgt, (n_rows, in_dim), jnp.float32)
    future_valid = jnp.array([[1.0, 1.0], [1.0, 0.0]], jnp.float32)
    # Reparameterization noise (torch.randn_like equivalent), generated outside the kernel.
    eps = jax.random.normal(k_eps, (n_rows, latent_dim), jnp.float32)

    torch_params = init_params(k_par, in_dim, hidden_dim, latent_dim, condition_dim)
    kparams = prepare_kernel_params(torch_params)

    traj_loss, kld = traj_cvae_forward(context, target_hand, future_valid, eps, kparams)
    jax.block_until_ready((traj_loss, kld))

    # Reference check (same bf16 casts, pure JAX).
    ref_recon_rows, ref_kld_rows = cvae_reference(target_hand, context, eps, kparams,
                                                  latent_dim)
    ref_kld = (ref_kld_rows.reshape(batch, 2, -1).sum(-1) * future_valid).sum(1)
    ref_traj = (ref_recon_rows.reshape(batch, 2, -1).sum(-1) * future_valid).sum(1)

    assert traj_loss.shape == (batch,) and kld.shape == (batch,)
    assert bool(jnp.all(jnp.isfinite(traj_loss))) and bool(jnp.all(jnp.isfinite(kld)))
    assert bool(jnp.allclose(traj_loss, ref_traj, rtol=5e-2, atol=5e-2))
    assert bool(jnp.allclose(kld, ref_kld, rtol=5e-2, atol=5e-2))
    print("KERNEL_OK")
</pallas_src>

<mosaic_0001>
module attributes {stable_mosaic.version = 11 : i64} {
  func.func @cvae_loss_kernel(%arg0: i32, %arg1: memref<41x128xbf16, #tpu.memory_space<vmem>>, %arg2: memref<8x128xf32, #tpu.memory_space<vmem>>, %arg3: memref<16x128xbf16, #tpu.memory_space<vmem>>, %arg4: memref<64x41xbf16, #tpu.memory_space<vmem>>, %arg5: memref<32x32xbf16, #tpu.memory_space<vmem>>, %arg6: memref<32x1xf32, #tpu.memory_space<vmem>>, %arg7: memref<32x16xbf16, #tpu.memory_space<vmem>>, %arg8: memref<8x32xbf16, #tpu.memory_space<vmem>>, %arg9: memref<8x1xf32, #tpu.memory_space<vmem>>, %arg10: memref<2x128xf32, #tpu.memory_space<vmem>>) attributes {dimension_semantics = [#tpu.dimension_semantics<parallel>], iteration_bounds = array<i64: 1>, scalar_prefetch = 0 : i64, scratch_operands = 0 : i64, tpu.core_type = #tpu.core_type<tc>, window_params = [{transform_indices = @transform_0, window_bounds = array<i64: 41, 128>}, {transform_indices = @transform_1, window_bounds = array<i64: 8, 128>}, {transform_indices = @transform_2, window_bounds = array<i64: 16, 128>}, {pipeline_mode = #tpu.pipeline_mode<synchronous>, transform_indices = @transform_3, window_bounds = array<i64: 64, 41>}, {pipeline_mode = #tpu.pipeline_mode<synchronous>, transform_indices = @transform_4, window_bounds = array<i64: 32, 32>}, {pipeline_mode = #tpu.pipeline_mode<synchronous>, transform_indices = @transform_5, window_bounds = array<i64: 32, 1>}, {pipeline_mode = #tpu.pipeline_mode<synchronous>, transform_indices = @transform_6, window_bounds = array<i64: 32, 16>}, {pipeline_mode = #tpu.pipeline_mode<synchronous>, transform_indices = @transform_7, window_bounds = array<i64: 8, 32>}, {pipeline_mode = #tpu.pipeline_mode<synchronous>, transform_indices = @transform_8, window_bounds = array<i64: 8, 1>}, {transform_indices = @transform_9, window_bounds = array<i64: 2, 128>}]} {
    %c0 = arith.constant 0 : index
    %c0_0 = arith.constant 0 : index
    %0 = vector.load %arg1[%c0, %c0_0] : memref<41x128xbf16, #tpu.memory_space<vmem>>, vector<41x128xbf16>
    %c0_1 = arith.constant 0 : index
    %c0_2 = arith.constant 0 : index
    %1 = vector.load %arg2[%c0_1, %c0_2] : memref<8x128xf32, #tpu.memory_space<vmem>>, vector<8x128xf32>
    %c0_3 = arith.constant 0 : index
    %c0_4 = arith.constant 0 : index
    %2 = vector.load %arg3[%c0_3, %c0_4] : memref<16x128xbf16, #tpu.memory_space<vmem>>, vector<16x128xbf16>
    %3 = arith.extf %2 : vector<16x128xbf16> to vector<16x128xf32>
    %c0_5 = arith.constant 0 : index
    %c0_6 = arith.constant 0 : index
    %4 = vector.load %arg4[%c0_5, %c0_6] : memref<64x41xbf16, #tpu.memory_space<vmem>>, vector<64x41xbf16>
    %cst = arith.constant dense<0.000000e+00> : vector<64x128xf32>
    %5 = tpu.matmul %4, %0, %cst {dimension_numbers = #tpu.dot_dimension_numbers<[1], [0], [0], [1], [0, 0, 1, 1], [], []>} : vector<64x41xbf16>, vector<41x128xbf16>, vector<64x128xf32> -> vector<64x128xf32>
    %6 = vector.extract_strided_slice %5 {offsets = [0, 0], sizes = [32, 128], strides = [1, 1]} : vector<64x128xf32> to vector<32x128xf32>
    %cst_7 = arith.constant 0.000000e+00 : f32
    %7 = vector.broadcast %cst_7 : f32 to vector<32x128xf32>
    %8 = arith.cmpf ogt, %6, %7 : vector<32x128xf32>
    %9 = math.exp %6 : vector<32x128xf32>
    %cst_8 = arith.constant 1.000000e+00 : f32
    %10 = vector.broadcast %cst_8 : f32 to vector<32x128xf32>
    %11 = arith.subf %9, %10 : vector<32x128xf32>
    %12 = arith.select %8, %6, %11 : vector<32x128xi1>, vector<32x128xf32>
    %13 = vector.extract_strided_slice %5 {offsets = [32, 0], sizes = [32, 128], strides = [1, 1]} : vector<64x128xf32> to vector<32x128xf32>
    %c0_9 = arith.constant 0 : index
    %c0_10 = arith.constant 0 : index
    %14 = vector.load %arg5[%c0_9, %c0_10] : memref<32x32xbf16, #tpu.memory_space<vmem>>, vector<32x32xbf16>
    %15 = arith.truncf %12 : vector<32x128xf32> to vector<32x128xbf16>
    %cst_11 = arith.constant dense<0.000000e+00> : vector<32x128xf32>
    %16 = tpu.matmul %14, %15, %cst_11 {dimension_numbers = #tpu.dot_dimension_numbers<[1], [0], [0], [1], [0, 0, 1, 1], [], []>} : vector<32x32xbf16>, vector<32x128xbf16>, vector<32x128xf32> -> vector<32x128xf32>
    %c0_12 = arith.constant 0 : index
    %c0_13 = arith.constant 0 : index
    %17 = vector.load %arg6[%c0_12, %c0_13] : memref<32x1xf32, #tpu.memory_space<vmem>>, vector<32x1xf32>
    %18 = vector.broadcast %17 : vector<32x1xf32> to vector<32x128xf32>
    %19 = arith.addf %16, %18 : vector<32x128xf32>
    %20 = vector.extract_strided_slice %19 {offsets = [0, 0], sizes = [16, 128], strides = [1, 1]} : vector<32x128xf32> to vector<16x128xf32>
    %21 = vector.extract_strided_slice %19 {offsets = [16, 0], sizes = [16, 128], strides = [1, 1]} : vector<32x128xf32> to vector<16x128xf32>
    %cst_14 = arith.constant 5.000000e-01 : f32
    %22 = vector.broadcast %cst_14 : f32 to vector<16x128xf32>
    %23 = arith.mulf %22, %21 : vector<16x128xf32>
    %24 = math.exp %23 : vector<16x128xf32>
    %25 = arith.mulf %3, %24 : vector<16x128xf32>
    %26 = arith.addf %20, %25 : vector<16x128xf32>
    %27 = arith.mulf %24, %24 : vector<16x128xf32>
    %c0_15 = arith.constant 0 : index
    %c0_16 = arith.constant 0 : index
    %28 = vector.load %arg7[%c0_15, %c0_16] : memref<32x16xbf16, #tpu.memory_space<vmem>>, vector<32x16xbf16>
    %29 = arith.truncf %26 : vector<16x128xf32> to vector<16x128xbf16>
    %cst_17 = arith.constant dense<0.000000e+00> : vector<32x128xf32>
    %30 = tpu.matmul %28, %29, %cst_17 {dimension_numbers = #tpu.dot_dimension_numbers<[1], [0], [0], [1], [0, 0, 1, 1], [], []>} : vector<32x16xbf16>, vector<16x128xbf16>, vector<32x128xf32> -> vector<32x128xf32>
    %31 = arith.addf %30, %13 : vector<32x128xf32>
    %cst_18 = arith.constant 0.000000e+00 : f32
    %32 = vector.broadcast %cst_18 : f32 to vector<32x128xf32>
    %33 = arith.cmpf ogt, %31, %32 : vector<32x128xf32>
    %34 = math.exp %31 : vector<32x128xf32>
    %cst_19 = arith.constant 1.000000e+00 : f32
    %35 = vector.broadcast %cst_19 : f32 to vector<32x128xf32>
    %36 = arith.subf %34, %35 : vector<32x128xf32>
    %37 = arith.select %33, %31, %36 : vector<32x128xi1>, vector<32x128xf32>
    %c0_20 = arith.constant 0 : index
    %c0_21 = arith.constant 0 : index
    %38 = vector.load %arg8[%c0_20, %c0_21] : memref<8x32xbf16, #tpu.memory_space<vmem>>, vector<8x32xbf16>
    %39 = arith.truncf %37 : vector<32x128xf32> to vector<32x128xbf16>
    %cst_22 = arith.constant dense<0.000000e+00> : vector<8x128xf32>
    %40 = tpu.matmul %38, %39, %cst_22 {dimension_numbers = #tpu.dot_dimension_numbers<[1], [0], [0], [1], [0, 0, 1, 1], [], []>} : vector<8x32xbf16>, vector<32x128xbf16>, vector<8x128xf32> -> vector<8x128xf32>
    %c0_23 = arith.constant 0 : index
    %c0_24 = arith.constant 0 : index
    %41 = vector.load %arg9[%c0_23, %c0_24] : memref<8x1xf32, #tpu.memory_space<vmem>>, vector<8x1xf32>
    %42 = vector.broadcast %41 : vector<8x1xf32> to vector<8x128xf32>
    %43 = arith.addf %40, %42 : vector<8x128xf32>
    %44 = arith.subf %43, %1 : vector<8x128xf32>
    %45 = arith.mulf %44, %44 : vector<8x128xf32>
    %cst_25 = arith.constant dense<0.000000e+00> : vector<128xf32>
    %46 = vector.multi_reduction <add>, %45, %cst_25 [0] : vector<8x128xf32> to vector<128xf32>
    %47 = vector.shape_cast %46 : vector<128xf32> to vector<1x128xf32>
    %cst_26 = arith.constant 1.000000e+00 : f32
    %48 = vector.broadcast %cst_26 : f32 to vector<16x128xf32>
    %49 = arith.addf %48, %21 : vector<16x128xf32>
    %50 = arith.mulf %20, %20 : vector<16x128xf32>
    %51 = arith.subf %49, %50 : vector<16x128xf32>
    %52 = arith.subf %51, %27 : vector<16x128xf32>
    %cst_27 = arith.constant dense<0.000000e+00> : vector<128xf32>
    %53 = vector.multi_reduction <add>, %52, %cst_27 [0] : vector<16x128xf32> to vector<128xf32>
    %54 = vector.shape_cast %53 : vector<128xf32> to vector<1x128xf32>
    %cst_28 = arith.constant -5.000000e-01 : f32
    %55 = vector.broadcast %cst_28 : f32 to vector<1x128xf32>
    %56 = arith.mulf %55, %54 : vector<1x128xf32>
    %57 = tpu.concatenate %47, %56 in 0 : vector<1x128xf32>, vector<1x128xf32> -> vector<2x128xf32>
    %c0_29 = arith.constant 0 : index
    %c0_30 = arith.constant 0 : index
    %58 = vector.load %arg10[%c0_29, %c0_30] : memref<2x128xf32, #tpu.memory_space<vmem>>, vector<2x128xf32>
    tpu.vector_store %arg10[%c0_29, %c0_30], %57 {strides = array<i32>} : memref<2x128xf32, #tpu.memory_space<vmem>>, vector<2x128xf32>,
    return
  }
  func.func @transform_0(%arg0: i32) -> (i32, i32) {
    %c0_i32 = arith.constant 0 : i32
    %c0_i32_0 = arith.constant 0 : i32
    return %c0_i32, %arg0 : i32, i32
  }
  func.func @transform_1(%arg0: i32) -> (i32, i32) {
    %c0_i32 = arith.constant 0 : i32
    %c0_i32_0 = arith.constant 0 : i32
    return %c0_i32, %arg0 : i32, i32
  }
  func.func @transform_2(%arg0: i32) -> (i32, i32) {
    %c0_i32 = arith.constant 0 : i32
    %c0_i32_0 = arith.constant 0 : i32
    return %c0_i32, %arg0 : i32, i32
  }
  func.func @transform_3(%arg0: i32) -> (i32, i32) {
    %c0_i32 = arith.constant 0 : i32
    %c0_i32_0 = arith.constant 0 : i32
    %c0_i32_1 = arith.constant 0 : i32
    return %c0_i32, %c0_i32_0 : i32, i32
  }
  func.func @transform_4(%arg0: i32) -> (i32, i32) {
    %c0_i32 = arith.constant 0 : i32
    %c0_i32_0 = arith.constant 0 : i32
    %c0_i32_1 = arith.constant 0 : i32
    return %c0_i32, %c0_i32_0 : i32, i32
  }
  func.func @transform_5(%arg0: i32) -> (i32, i32) {
    %c0_i32 = arith.constant 0 : i32
    %c0_i32_0 = arith.constant 0 : i32
    %c0_i32_1 = arith.constant 0 : i32
    return %c0_i32, %c0_i32_0 : i32, i32
  }
  func.func @transform_6(%arg0: i32) -> (i32, i32) {
    %c0_i32 = arith.constant 0 : i32
    %c0_i32_0 = arith.constant 0 : i32
    %c0_i32_1 = arith.constant 0 : i32
    return %c0_i32, %c0_i32_0 : i32, i32
  }
  func.func @transform_7(%arg0: i32) -> (i32, i32) {
    %c0_i32 = arith.constant 0 : i32
    %c0_i32_0 = arith.constant 0 : i32
    %c0_i32_1 = arith.constant 0 : i32
    return %c0_i32, %c0_i32_0 : i32, i32
  }
  func.func @transform_8(%arg0: i32) -> (i32, i32) {
    %c0_i32 = arith.constant 0 : i32
    %c0_i32_0 = arith.constant 0 : i32
    %c0_i32_1 = arith.constant 0 : i32
    return %c0_i32, %c0_i32_0 : i32, i32
  }
  func.func @transform_9(%arg0: i32) -> (i32, i32) {
    %c0_i32 = arith.constant 0 : i32
    %c0_i32_0 = arith.constant 0 : i32
    return %c0_i32, %arg0 : i32, i32
  }
}

</mosaic_0001>

<llo_original>
// kernel: tpu_custom_call.1
$region0: #{tpu_custom_call.1}
  #allocation0 [shape = 'u32[]', space=smem, size = 0x4, offset = 0x4, fixed_abs, tag = 'smem constant byte address 0x4 - core index']
  #allocation1 [shape = 'u32[144,128]{1,0:T(1,128)}', space=vmem, size = 0x12000, scoped, tag = 'internal scratch']
  %s0 = inlined_call_operand.vmem [shape: bf16[41,128], index: 0, kind: input, shape index: {}]
  %s1 = inlined_call_operand.vmem [shape: f32[8,128], index: 1, kind: input, shape index: {}]
  %s2 = inlined_call_operand.vmem [shape: bf16[16,128], index: 2, kind: input, shape index: {}]
  %s3 = inlined_call_operand.vmem [shape: bf16[64,41], index: 3, kind: input, shape index: {}]
  %s4 = inlined_call_operand.vmem [shape: bf16[32,32], index: 4, kind: input, shape index: {}]
  %s5 = inlined_call_operand.vmem [shape: f32[32,1], index: 5, kind: input, shape index: {}]
  %s6 = inlined_call_operand.vmem [shape: bf16[32,16], index: 6, kind: input, shape index: {}]
  %s7 = inlined_call_operand.vmem [shape: bf16[8,32], index: 7, kind: input, shape index: {}]
  %s8 = inlined_call_operand.vmem [shape: f32[8,1], index: 8, kind: input, shape index: {}]
  %s9 = inlined_call_operand.hbm [shape: f32[2,128], index: 9, kind: output, shape index: {}]
  %s10 = sld [smem:[#allocation0]]
  $region46: #{tpu_custom_call.1} parent=0
    _
  %s12 = ssub.s32 1, %s10
  %s13 = scalar_select 0, %s12, %s10
  $region1: #{tpu_custom_call.1} parent=0
    #allocation2 [shape = 'u8[1024]{0}', space=vmem, size = 0x400, scoped, tag = 'output window, operand 0, single buffered']
    #allocation3 [shape = 's32[1]{0}', space=sflag, size = 0x4, scoped, tag = 'scoped memory for tpu_custom_call.1']
    %14 = vsyncpa [#allocation3], 0
    // Predicated region
    $region2: #{tpu_custom_call.1} parent=1 // pred_check
      _
    $region3: #{tpu_custom_call.1} parent=1 // pred_check_branch
      %16 = sbr.rel (0) target = $region5
    $region4: #{tpu_custom_call.1} parent=1 // pred_region
      _
    $region5: #{tpu_custom_call.1} parent=1 // pred_fallthru
      _
    // Predicated region
    $region6: #{tpu_custom_call.1} parent=1 // pred_check
      _
    $region7: #{tpu_custom_call.1} parent=1 // pred_check_branch
      %18 = sbr.rel (0) target = $region9
    $region8: #{tpu_custom_call.1} parent=1 // pred_region
      _
    $region9: #{tpu_custom_call.1} parent=1 // pred_fallthru
      _
    // Predicated region
    $region10: #{tpu_custom_call.1} parent=1 // pred_check
      _
    $region11: #{tpu_custom_call.1} parent=1 // pred_check_branch
      %20 = sbr.rel (0) target = $region13
    $region12: #{tpu_custom_call.1} parent=1 // pred_region
      _
    $region13: #{tpu_custom_call.1} parent=1 // pred_fallthru
      _
    // Predicated region
    $region14: #{tpu_custom_call.1} parent=1 // pred_check
      _
    $region15: #{tpu_custom_call.1} parent=1 // pred_check_branch
      %22 = sbr.rel (0) target = $region17
    $region16: #{tpu_custom_call.1} parent=1 // pred_region
      _
    $region17: #{tpu_custom_call.1} parent=1 // pred_fallthru
      _
    // Predicated region
    $region18: #{tpu_custom_call.1} parent=1 // pred_check
      _
    $region19: #{tpu_custom_call.1} parent=1 // pred_check_branch
      %24 = sbr.rel (0) target = $region21
    $region20: #{tpu_custom_call.1} parent=1 // pred_region
      _
    $region21: #{tpu_custom_call.1} parent=1 // pred_fallthru
      _
    // Predicated region
    $region22: #{tpu_custom_call.1} parent=1 // pred_check
      _
    $region23: #{tpu_custom_call.1} parent=1 // pred_check_branch
      %26 = sbr.rel (0) target = $region25
    $region24: #{tpu_custom_call.1} parent=1 // pred_region
      _
    $region25: #{tpu_custom_call.1} parent=1 // pred_fallthru
      _
    // Predicated region
    $region26: #{tpu_custom_call.1} parent=1 // pred_check
      _
    $region27: #{tpu_custom_call.1} parent=1 // pred_check_branch
      %28 = sbr.rel (0) target = $region29
    $region28: #{tpu_custom_call.1} parent=1 // pred_region
      _
    $region29: #{tpu_custom_call.1} parent=1 // pred_fallthru
      _
    // Predicated region
    $region30: #{tpu_custom_call.1} parent=1 // pred_check
      _
    $region31: #{tpu_custom_call.1} parent=1 // pred_check_branch
      %30 = sbr.rel (0) target = $region33
    $region32: #{tpu_custom_call.1} parent=1 // pred_region
      _
    $region33: #{tpu_custom_call.1} parent=1 // pred_fallthru
      _
    // Predicated region
    $region34: #{tpu_custom_call.1} parent=1 // pred_check
      _
    $region35: #{tpu_custom_call.1} parent=1 // pred_check_branch
      %32 = sbr.rel (0) target = $region37
    $region36: #{tpu_custom_call.1} parent=1 // pred_region
      _
    $region37: #{tpu_custom_call.1} parent=1 // pred_fallthru
      _
    %v34 = vld [vmem:[%s0] sm:$0xf]
    %v35 = vld [vmem:[%s0 + $0x4] sm:$0xf]
    %v36 = vld [vmem:[%s0 + $0x8] sm:$0xf]
    %v37 = vld [vmem:[%s0 + $0xc] sm:$0xf]
    %v38 = vld [vmem:[%s0 + $0x10] sm:$0xf]
    %v39 = vld [vmem:[%s0 + $0x14] sm:$0x1]
    %v40 = vld [vmem:[%s1] sm:$0xff]
    %v41 = vld [vmem:[%s2] sm:$0xf]
    %v42 = vld [vmem:[%s2 + $0x4] sm:$0xf]
    %v43 = vunpack.c.l.bf16 %v41
    %v44 = vunpack.c.l.bf16 %v42
    %v45 = vld [vmem:[%s3] sm:$0xf]
    %v46 = vld [vmem:[%s3 + $0x4] sm:$0xf]
    %v47 = vld [vmem:[%s3 + $0x8] sm:$0xf]
    %v48 = vld [vmem:[%s3 + $0xc] sm:$0xf]
    %v49 = vld [vmem:[%s3 + $0x10] sm:$0xf]
    %v50 = vld [vmem:[%s3 + $0x14] sm:$0xf]
    %v51 = vld [vmem:[%s3 + $0x18] sm:$0xf]
    %v52 = vld [vmem:[%s3 + $0x1c] sm:$0xf]
    %v61 = vunpack.c.l.b16 %v45
    %v62 = vunpack.c.l.b16 %v46
    %v63 = vunpack.c.l.b16 %v47
    %v64 = vunpack.c.l.b16 %v48
    %v65 = vunpack.c.l.b16 %v49
    %v66 = vunpack.c.l.b16 %v50
    %v67 = vunpack.c.l.b16 %v51
    %v68 = vunpack.c.l.b16 %v52
    %v69 = vpack.c.b16 %v62, %v61
    %v70 = vpack.c.b16 %v64, %v63
    %v71 = vpack.c.b16 %v66, %v65
    %v72 = vpack.c.b16 %v68, %v67
    %v79 = vunpack.c.l.b16 %v34
    %v80 = vunpack.c.l.b16 %v35
    %v81 = vunpack.c.l.b16 %v36
    %v82 = vunpack.c.l.b16 %v37
    %v83 = vunpack.c.l.b16 %v38
    %v84 = vunpack.c.l.b16 %v39
    %v85 = vpack.c.b16 %v80, %v79
    %v86 = vpack.c.b16 %v82, %v81
    %v87 = vpack.c.b16 %v84, %v83
    %vm90 = vcmask 334848
    %v92 = vsel %vm90, %v69, 0
    %v95 = vsel %vm90, %v70, 0
    %v98 = vsel %vm90, %v71, 0
    %v101 = vsel %vm90, %v72, 0
    %vm103 = vcmask 1043456
    %vm104 = vcmask 1044480
    %v105 = vsel %vm103, 4294967295, 65535
    %v106 = vsel %vm104, %v105, 0
    %v108 = vand.u32 %v87, %v106
    %110 = vmatprep.subr.bf16.mxu0 0
    %111 = vmatpush1.bf16.msra.mxu0 %v85
    %112 = vmatprep.subr.bf16.mxu0 0
    %113 = vmatpush1.bf16.msra.mxu0 %v86
    %114 = vmatprep.subr.bf16.mxu0 0
    %115 = vmatpush1.bf16.msra.mxu0 %v108
    %116 = vmatprep.subr.bf16.mxu0 0
    %117 = vmatpush1.bf16.msra.mxu0 0
    %118 = vmatprep.subr.bf16.mxu0 0
    %119 = vmatpush1.bf16.msra.mxu0 0
    %120 = vmatprep.subr.bf16.mxu0 0
    %121 = vmatpush1.bf16.msra.mxu0 0
    %122 = vmatprep.subr.bf16.mxu0 0
    %123 = vmatpush1.bf16.msra.mxu0 0
    %124 = vmatprep.subr.bf16.mxu0 0
    %125 = vmatpush1.bf16.msra.mxu0 0
    %126 = vmatprep.subr.bf16.mxu0 0
    %127 = vmatpush1.bf16.msra.mxu0 0
    %128 = vmatprep.subr.bf16.mxu0 0
    %129 = vmatpush1.bf16.msra.mxu0 0
    %130 = vmatprep.subr.bf16.mxu0 0
    %131 = vmatpush1.bf16.msra.mxu0 0
    %132 = vmatprep.subr.bf16.mxu0 0
    %133 = vmatpush1.bf16.msra.mxu0 0
    %134 = vmatprep.subr.bf16.mxu0 0
    %135 = vmatpush1.bf16.msra.mxu0 0
    %136 = vmatprep.subr.bf16.mxu0 0
    %137 = vmatpush1.bf16.msra.mxu0 0
    %138 = vmatprep.subr.bf16.mxu0 0
    %139 = vmatpush1.bf16.msra.mxu0 0
    %140 = vmatprep.subr.bf16.mxu0 0
    %141 = vmatpush1.bf16.msra.mxu0 0
    %142 = vmatprep.mubr.bf16.mxu0 0
    %143 = vmatmul.mubr.bf16.gmra.mrb[0].mxu0 %v92
    %v144 = vpop.f32.mrb[0].mxu0
    %v145 = vadd.f32 0.0, %v144
    %v146 = vpop.f32.mrb[0].mxu0
    %v147 = vpop.f32.mrb[0].mxu0
    %v148 = vadd.f32 0.0, %v147
    %v149 = vpop.f32.mrb[0].mxu0
    %150 = vmatprep.mubr.bf16.mxu0 0
    %151 = vmatmul.mubr.bf16.gmra.mrb[0].mxu0 %v95
    %v152 = vpop.f32.mrb[0].mxu0
    %v153 = vadd.f32 0.0, %v152
    %v154 = vpop.f32.mrb[0].mxu0
    %v155 = vpop.f32.mrb[0].mxu0
    %v156 = vadd.f32 0.0, %v155
    %v157 = vpop.f32.mrb[0].mxu0
    %158 = vmatprep.mubr.bf16.mxu0 0
    %159 = vmatmul.mubr.bf16.gmra.mrb[0].mxu0 %v98
    %v160 = vpop.f32.mrb[0].mxu0
    %v161 = vadd.f32 0.0, %v160
    %v162 = vpop.f32.mrb[0].mxu0
    %v163 = vpop.f32.mrb[0].mxu0
    %v164 = vadd.f32 0.0, %v163
    %v165 = vpop.f32.mrb[0].mxu0
    %166 = vmatprep.mubr.bf16.mxu0 0
    %167 = vmatmul.mubr.bf16.gmra.mrb[0].mxu0 %v101
    %v168 = vpop.f32.mrb[0].mxu0
    %v169 = vadd.f32 0.0, %v168
    %v170 = vpop.f32.mrb[0].mxu0
    %v171 = vpop.f32.mrb[0].mxu0
    %v172 = vadd.f32 0.0, %v171
    %v173 = vpop.f32.mrb[0].mxu0
    %174 = vdwg.mxu0
    %vm175 = vcmp.gt.f32.partialorder %v145, 0.0
    %vm176 = vcmp.gt.f32.partialorder %v148, 0.0
    %vm177 = vcmp.gt.f32.partialorder %v153, 0.0
    %vm178 = vcmp.gt.f32.partialorder %v156, 0.0
    %v179 = vmul.f32 %v145, 1.442695
    %v180 = vpow.pop %v179
    %v181 = vmul.f32 %v148, 1.442695
    %v182 = vpow.pop %v181
    %v183 = vmul.f32 %v153, 1.442695
    %v184 = vpow.pop %v183
    %v185 = vmul.f32 %v156, 1.442695
    %v186 = vpow.pop %v185
    %v187 = vsub.f32 %v180, 1.0
    %v188 = vsub.f32 %v182, 1.0
    %v189 = vsub.f32 %v184, 1.0
    %v190 = vsub.f32 %v186, 1.0
    %v191 = vsel %vm175, %v145, %v187
    %v192 = vsel %vm176, %v148, %v188
    %v193 = vsel %vm177, %v153, %v189
    %v194 = vsel %vm178, %v156, %v190
    %v195 = vld [vmem:[%s4] sm:$0xf]
    %v196 = vld [vmem:[%s4 + $0x4] sm:$0xf]
    %v197 = vld [vmem:[%s4 + $0x8] sm:$0xf]
    %v198 = vld [vmem:[%s4 + $0xc] sm:$0xf]
    %v199 = vpack.c.bf16 %v192, %v191
    %v200 = vpack.c.bf16 %v194, %v193
    %v201 = vld [vmem:[%s5] sm:$0xff]
    %v202 = vld [vmem:[%s5 + $0x8] sm:$0xff]
    %v203 = vld [vmem:[%s5 + $0x10] sm:$0xff]
    %v204 = vld [vmem:[%s5 + $0x18] sm:$0xff]
    %206 = vset.pattern.permute.xlu0 0
    %207 = vperm.xlu0 %206, %v201
    %v208 = vpop.permute.xlu0 %207
    %211 = vset.pattern.permute.xlu0 0
    %212 = vperm.xlu0 %211, %v202
    %v213 = vpop.permute.xlu0 %212
    %216 = vset.pattern.permute.xlu0 0
    %217 = vperm.xlu0 %216, %v203
    %v218 = vpop.permute.xlu0 %217
    %221 = vset.pattern.permute.xlu0 0
    %222 = vperm.xlu0 %221, %v204
    %v223 = vpop.permute.xlu0 %222
    %v229 = vunpack.c.l.b16 %v195
    %v230 = vunpack.c.l.b16 %v196
    %v231 = vunpack.c.l.b16 %v197
    %v232 = vunpack.c.l.b16 %v198
    %v233 = vpack.c.b16 %v230, %v229
    %v234 = vpack.c.b16 %v232, %v231
    %vm235 = vcmask 261120
    %v237 = vsel %vm235, %v233, 0
    %v240 = vsel %vm235, %v234, 0
    %242 = vmatprep.subr.bf16.mxu0 0
    %243 = vmatpush1.bf16.msra.mxu0 %v199
    %244 = vmatprep.subr.bf16.mxu0 0
    %245 = vmatpush1.bf16.msra.mxu0 %v200
    %246 = vmatprep.subr.bf16.mxu0 0
    %247 = vmatpush1.bf16.msra.mxu0 0
    %248 = vmatprep.subr.bf16.mxu0 0
    %249 = vmatpush1.bf16.msra.mxu0 0
    %250 = vmatprep.subr.bf16.mxu0 0
    %251 = vmatpush1.bf16.msra.mxu0 0
    %252 = vmatprep.subr.bf16.mxu0 0
    %253 = vmatpush1.bf16.msra.mxu0 0
    %254 = vmatprep.subr.bf16.mxu0 0
    %255 = vmatpush1.bf16.msra.mxu0 0
    %256 = vmatprep.subr.bf16.mxu0 0
    %257 = vmatpush1.bf16.msra.mxu0 0
    %258 = vmatprep.subr.bf16.mxu0 0
    %259 = vmatpush1.bf16.msra.mxu0 0
    %260 = vmatprep.subr.bf16.mxu0 0
    %261 = vmatpush1.bf16.msra.mxu0 0
    %262 = vmatprep.subr.bf16.mxu0 0
    %263 = vmatpush1.bf16.msra.mxu0 0
    %264 = vmatprep.subr.bf16.mxu0 0
    %265 = vmatpush1.bf16.msra.mxu0 0
    %266 = vmatprep.subr.bf16.mxu0 0
    %267 = vmatpush1.bf16.msra.mxu0 0
    %268 = vmatprep.subr.bf16.mxu0 0
    %269 = vmatpush1.bf16.msra.mxu0 0
    %270 = vmatprep.subr.bf16.mxu0 0
    %271 = vmatpush1.bf16.msra.mxu0 0
    %272 = vmatprep.subr.bf16.mxu0 0
    %273 = vmatpush1.bf16.msra.mxu0 0
    %274 = vmatprep.mubr.bf16.mxu0 0
    %275 = vmatmul.mubr.bf16.gmra.mrb[0].mxu0 %v237
    %v276 = vpop.f32.mrb[0].mxu0
    %v277 = vadd.f32 %v208, %v276
    %v278 = vpop.f32.mrb[0].mxu0
    %v279 = vpop.f32.mrb[0].mxu0
    %v280 = vadd.f32 %v213, %v279
    %v281 = vpop.f32.mrb[0].mxu0
    %282 = vmatprep.mubr.bf16.mxu0 0
    %283 = vmatmul.mubr.bf16.gmra.mrb[0].mxu0 %v240
    %v284 = vpop.f32.mrb[0].mxu0
    %v285 = vadd.f32 %v218, %v284
    %v286 = vpop.f32.mrb[0].mxu0
    %v287 = vpop.f32.mrb[0].mxu0
    %v288 = vadd.f32 %v223, %v287
    %v289 = vpop.f32.mrb[0].mxu0
    %290 = vdwg.mxu0
    %v291 = vmul.f32 %v285, 0.5
    %v292 = vmul.f32 %v288, 0.5
    %v293 = vmul.f32 %v291, 1.442695
    %v294 = vpow.pop %v293
    %v295 = vmul.f32 %v292, 1.442695
    %v296 = vpow.pop %v295
    %v297 = vmul.f32 %v43, %v294
    %v298 = vmul.f32 %v44, %v296
    %v299 = vadd.f32 %v277, %v297
    %v300 = vadd.f32 %v280, %v298
    %v301 = vmul.f32 %v294, %v294
    %v302 = vmul.f32 %v296, %v296
    %v303 = vld [vmem:[%s6] sm:$0xf]
    %v304 = vld [vmem:[%s6 + $0x4] sm:$0xf]
    %v305 = vld [vmem:[%s6 + $0x8] sm:$0xf]
    %v306 = vld [vmem:[%s6 + $0xc] sm:$0xf]
    %v307 = vpack.c.bf16 %v300, %v299
    %v312 = vunpack.c.l.b16 %v303
    %v313 = vunpack.c.l.b16 %v304
    %v314 = vunpack.c.l.b16 %v305
    %v315 = vunpack.c.l.b16 %v306
    %v316 = vpack.c.b16 %v313, %v312
    %v317 = vpack.c.b16 %v315, %v314
    %vm318 = vcmask 130048
    %v320 = vsel %vm318, %v316, 0
    %v323 = vsel %vm318, %v317, 0
    %325 = vmatprep.subr.bf16.mxu0 0
    %326 = vmatpush1.bf16.msra.mxu0 %v307
    %327 = vmatprep.subr.bf16.mxu0 0
    %328 = vmatpush1.bf16.msra.mxu0 0
    %329 = vmatprep.subr.bf16.mxu0 0
    %330 = vmatpush1.bf16.msra.mxu0 0
    %331 = vmatprep.subr.bf16.mxu0 0
    %332 = vmatpush1.bf16.msra.mxu0 0
    %333 = vmatprep.subr.bf16.mxu0 0
    %334 = vmatpush1.bf16.msra.mxu0 0
    %335 = vmatprep.subr.bf16.mxu0 0
    %336 = vmatpush1.bf16.msra.mxu0 0
    %337 = vmatprep.subr.bf16.mxu0 0
    %338 = vmatpush1.bf16.msra.mxu0 0
    %339 = vmatprep.subr.bf16.mxu0 0
    %340 = vmatpush1.bf16.msra.mxu0 0
    %341 = vmatprep.subr.bf16.mxu0 0
    %342 = vmatpush1.bf16.msra.mxu0 0
    %343 = vmatprep.subr.bf16.mxu0 0
    %344 = vmatpush1.bf16.msra.mxu0 0
    %345 = vmatprep.subr.bf16.mxu0 0
    %346 = vmatpush1.bf16.msra.mxu0 0
    %347 = vmatprep.subr.bf16.mxu0 0
    %348 = vmatpush1.bf16.msra.mxu0 0
    %349 = vmatprep.subr.bf16.mxu0 0
    %350 = vmatpush1.bf16.msra.mxu0 0
    %351 = vmatprep.subr.bf16.mxu0 0
    %352 = vmatpush1.bf16.msra.mxu0 0
    %353 = vmatprep.subr.bf16.mxu0 0
    %354 = vmatpush1.bf16.msra.mxu0 0
    %355 = vmatprep.subr.bf16.mxu0 0
    %356 = vmatpush1.bf16.msra.mxu0 0
    %357 = vmatprep.mubr.bf16.mxu0 0
    %358 = vmatmul.mubr.bf16.gmra.mrb[0].mxu0 %v320
    %v359 = vpop.f32.mrb[0].mxu0
    %v360 = vadd.f32 %v161, %v359
    %v361 = vpop.f32.mrb[0].mxu0
    %v362 = vpop.f32.mrb[0].mxu0
    %v363 = vadd.f32 %v164, %v362
    %v364 = vpop.f32.mrb[0].mxu0
    %365 = vmatprep.mubr.bf16.mxu0 0
    %366 = vmatmul.mubr.bf16.gmra.mrb[0].mxu0 %v323
    %v367 = vpop.f32.mrb[0].mxu0
    %v368 = vadd.f32 %v169, %v367
    %v369 = vpop.f32.mrb[0].mxu0
    %v370 = vpop.f32.mrb[0].mxu0
    %v371 = vadd.f32 %v172, %v370
    %v372 = vpop.f32.mrb[0].mxu0
    %373 = vdwg.mxu0
    %vm374 = vcmp.gt.f32.partialorder %v360, 0.0
    %vm375 = vcmp.gt.f32.partialorder %v363, 0.0
    %vm376 = vcmp.gt.f32.partialorder %v368, 0.0
    %vm377 = vcmp.gt.f32.partialorder %v371, 0.0
    %v378 = vmul.f32 %v360, 1.442695
    %v379 = vpow.pop %v378
    %v380 = vmul.f32 %v363, 1.442695
    %v381 = vpow.pop %v380
    %v382 = vmul.f32 %v368, 1.442695
    %v383 = vpow.pop %v382
    %v384 = vmul.f32 %v371, 1.442695
    %v385 = vpow.pop %v384
    %v386 = vsub.f32 %v379, 1.0
    %v387 = vsub.f32 %v381, 1.0
    %v388 = vsub.f32 %v383, 1.0
    %v389 = vsub.f32 %v385, 1.0
    %v390 = vsel %vm374, %v360, %v386
    %v391 = vsel %vm375, %v363, %v387
    %v392 = vsel %vm376, %v368, %v388
    %v393 = vsel %vm377, %v371, %v389
    %v394 = vld [vmem:[%s7] sm:$0xf]
    %v395 = vpack.c.bf16 %v391, %v390
    %v396 = vpack.c.bf16 %v393, %v392
    %v397 = vld [vmem:[%s8] sm:$0xff]
    %399 = vset.pattern.permute.xlu0 0
    %400 = vperm.xlu0 %399, %v397
    %v401 = vpop.permute.xlu0 %400
    %v404 = vsel %vm235, %v394, 0
    %406 = vmatprep.subr.bf16.mxu0 0
    %407 = vmatpush1.bf16.msra.mxu0 %v395
    %408 = vmatprep.subr.bf16.mxu0 0
    %409 = vmatpush1.bf16.msra.mxu0 %v396
    %410 = vmatprep.subr.bf16.mxu0 0
    %411 = vmatpush1.bf16.msra.mxu0 0
    %412 = vmatprep.subr.bf16.mxu0 0
    %413 = vmatpush1.bf16.msra.mxu0 0
    %414 = vmatprep.subr.bf16.mxu0 0
    %415 = vmatpush1.bf16.msra.mxu0 0
    %416 = vmatprep.subr.bf16.mxu0 0
    %417 = vmatpush1.bf16.msra.mxu0 0
    %418 = vmatprep.subr.bf16.mxu0 0
    %419 = vmatpush1.bf16.msra.mxu0 0
    %420 = vmatprep.subr.bf16.mxu0 0
    %421 = vmatpush1.bf16.msra.mxu0 0
    %422 = vmatprep.subr.bf16.mxu0 0
    %423 = vmatpush1.bf16.msra.mxu0 0
    %424 = vmatprep.subr.bf16.mxu0 0
    %425 = vmatpush1.bf16.msra.mxu0 0
    %426 = vmatprep.subr.bf16.mxu0 0
    %427 = vmatpush1.bf16.msra.mxu0 0
    %428 = vmatprep.subr.bf16.mxu0 0
    %429 = vmatpush1.bf16.msra.mxu0 0
    %430 = vmatprep.subr.bf16.mxu0 0
    %431 = vmatpush1.bf16.msra.mxu0 0
    %432 = vmatprep.subr.bf16.mxu0 0
    %433 = vmatpush1.bf16.msra.mxu0 0
    %434 = vmatprep.subr.bf16.mxu0 0
    %435 = vmatpush1.bf16.msra.mxu0 0
    %436 = vmatprep.subr.bf16.mxu0 0
    %437 = vmatpush1.bf16.msra.mxu0 0
    %438 = vmatprep.mubr.bf16.mxu0 0
    %439 = vmatmul.mubr.bf16.gmra.mrb[0].mxu0 %v404
    %v440 = vpop.f32.mrb[0].mxu0
    %v441 = vadd.f32 %v401, %v440
    %v442 = vpop.f32.mrb[0].mxu0
    %v443 = vpop.f32.mrb[0].mxu0
    %v444 = vpop.f32.mrb[0].mxu0
    %445 = vdwg.mxu0
    %v446 = vsub.f32 %v441, %v40
    %v447 = vmul.f32 %v446, %v446
    %v448 = vrot.slane %v447, 4
    %v449 = vadd.f32 %v447, %v448
    %v450 = vrot.slane %v449, 2
    %v451 = vadd.f32 %v449, %v450
    %v452 = vrot.slane %v451, 1
    %v453 = vadd.f32 %v451, %v452
    %v454 = vadd.f32 %v285, 1.0
    %v455 = vadd.f32 %v288, 1.0
    %v456 = vmul.f32 %v277, %v277
    %v457 = vmul.f32 %v280, %v280
    %v458 = vsub.f32 %v454, %v456
    %v459 = vsub.f32 %v455, %v457
    %v460 = vsub.f32 %v458, %v301
    %v461 = vsub.f32 %v459, %v302
    %v462 = vadd.f32 %v460, %v461
    %v463 = vrot.slane %v462, 4
    %v464 = vadd.f32 %v462, %v463
    %v465 = vrot.slane %v464, 2
    %v466 = vadd.f32 %v464, %v465
    %v467 = vrot.slane %v466, 1
    %v468 = vadd.f32 %v466, %v467
    %v469 = vmul.f32 %v468, -0.5
    %vm470 = vcmask 1040384
    %v471 = vsel %vm470, %v453, %v469
    %472 = vst [vmem:[#allocation2] sm:$0x3] %v471
    // Predicated region
    $region38: #{tpu_custom_call.1} parent=1 // pred_check
      _
    $region39: #{tpu_custom_call.1} parent=1 // pred_check_branch
      %474 = sbr.rel (0) target = $region41
    $region40: #{tpu_custom_call.1} parent=1 // pred_region
      %s476 = ssub.s32 32, 32
      %477 = vsyncadd [#allocation3], %s476
      %s479 = sshll.u32 [#allocation2], 4
      %s480 = int_to_ptr.vmem [resolvable:$true] %s479
      %482 = dma.vmem_to_hbm [thread:$0]  %s480, 32, %s9, [#allocation3]
    $region41: #{tpu_custom_call.1} parent=1 // pred_fallthru
      _
    // Predicated region
    $region42: #{tpu_custom_call.1} parent=1 // pred_check
      _
    $region43: #{tpu_custom_call.1} parent=1 // pred_check_branch
      %484 = sbr.rel (0) target = $region45
    $region44: #{tpu_custom_call.1} parent=1 // pred_region
      %485 = dma.done [#allocation3], 32
    $region45: #{tpu_custom_call.1} parent=1 // pred_fallthru
      _
    %486 = vsyncpa [#allocation3], 1

</llo_original>
